<compile_context>
chip_gen: v6e
topology: v6e:2x2x1
jax: 0.10.0
libtpu: 0.0.40
codegen_flags: <defaults>
</compile_context>

<pallas_src>
import functools

import jax
import jax.numpy as jnp
from jax.experimental import pallas as pl
from jax.experimental.pallas import tpu as pltpu


# --------------------------------------------------------------------------
# VMEM budgeting helpers
# --------------------------------------------------------------------------
def _derive_vmem_limit():
    """Per-generation VMEM budget: ~3/4 of capacity, capped at 100 MiB."""
    cap = 64 * 1024 * 1024  # conservative fallback (v7x has 64 MiB / TensorCore)
    try:
        info = pltpu.get_tpu_info()
        cap = int(getattr(info, "vmem_capacity_bytes", cap))
    except Exception:
        pass
    return min((cap * 3) // 4, 100 * 1024 * 1024)


def _fused_vmem_estimate(tb, n, dim, d, dh, x_bytes, cd_bytes, out_bytes):
    """Rough VMEM footprint of one grid step (inputs double-buffered)."""
    two_d = 2 * d
    x_blk = 2 * tb * n * dim * x_bytes                       # x block (double-buffered)
    o_blk = 2 * tb * n * dh * out_bytes                      # output block
    w_blk = 2 * (dim * two_d * cd_bytes + two_d * dh * cd_bytes
                 + 3 * two_d * 4 + dh * 4 + two_d * two_d * 4)
    interm = tb * n * (two_d * 4 * 3 + dim * cd_bytes)       # qk / qk_scaled / temps
    return x_blk + o_blk + w_blk + interm


# --------------------------------------------------------------------------
# Fused LinearAttention kernel (one grid step == one batch tile, all tokens)
# --------------------------------------------------------------------------
def _linear_attention_kernel(x_ref, wqk_ref, bqk_ref, qwp_ref, wstack_ref,
                             c_ref, kshift_ref, qmask_ref, o_ref, *, compute_dtype):
    TB, N, dim = x_ref.shape
    two_d = wqk_ref.shape[1]
    dh = wstack_ref.shape[1]
    cd = compute_dtype

    # In-kernel bf16 cast (hidden under the x DMA; no separate XLA convert pass).
    x = x_ref[...].astype(cd).reshape(TB * N, dim)

    # Fused q|k projection: one MXU pass over x with a 2D-wide RHS, f32 accumulation.
    qk = jnp.dot(x, wqk_ref[...], preferred_element_type=jnp.float32) + bqk_ref[...]  # (TB*N, 2D) f32

    # qw = (q @ query_weight) * scale as a lane-dense VPU multiply + lane reduce.
    # query_weight row is pre-scaled and zero-padded over the k half -> no slicing,
    # and qw stays f32 (no degenerate (2D,1) matvec on the MXU).
    qw = jnp.sum(qk * qwp_ref[...], axis=-1, keepdims=True)                           # (TB*N, 1) f32

    # attn = sum_n qw[n] * q[n, :]: f32 VPU multiply + token-axis reduce (no bf16
    # M=1 MXU matmul, no bf16 rounding of qw).  Reducing the full 2D-wide tile
    # costs the same vregs since 2D < 128 lanes; the k half of attn_full is unused.
    qk3 = qk.reshape(TB, N, two_d)
    qw3 = qw.reshape(TB, N, 1)
    attn_full = jnp.sum(qw3 * qk3, axis=1)                                            # (TB, 2D) f32

    # srow = [1,...,1 | attn]: place the q-half of attn_full into the k-half lanes
    # with a tiny 0/1 selector matmul (keeps everything f32 and avoids an
    # unaligned in-kernel lane concatenate).  q passes through unscaled, k is
    # multiplied by attn broadcast over tokens (== the module's repeat over N).
    srow = qmask_ref[...] + jnp.dot(attn_full, kshift_ref[...],
                                    preferred_element_type=jnp.float32)               # (TB, 2D) f32
    qk_scaled = (qk3 * srow.reshape(TB, 1, two_d)).reshape(TB * N, two_d).astype(cd)

    # Single stacked output matmul: [q | attn*k] @ [Wo ; Wp@Wo] + (bp@Wo + bo).
    out = jnp.dot(qk_scaled, wstack_ref[...],
                  preferred_element_type=jnp.float32) + c_ref[...]                    # (TB*N, dh) f32
    o_ref[...] = out.reshape(TB, N, dh).astype(o_ref.dtype)


# --------------------------------------------------------------------------
# Wrapper
# --------------------------------------------------------------------------
def linear_attention(x, params, *, scale, tb=1,
                     compute_dtype=jnp.bfloat16, out_dtype=jnp.bfloat16):
    """Fused LinearAttention forward.

    x: (B, N, dim).  params = (Wq, bq, Wk, bk, query_weight(D,1), Wp, bp, Wo, bo)
    with nn.Linear weights stored transposed, i.e. (in_features, out_features).
    """
    B, N, dim = x.shape
    wq, bq, wk, bk, qwp, wp, bp, wo, bo = params
    D = wq.shape[1]
    dh = wo.shape[1]
    two_d = 2 * D
    f32 = jnp.float32
    HI = jax.lax.Precision.HIGHEST
    cd = compute_dtype

    assert B % tb == 0, (B, tb)

    # ---- wrapper-side parameter fusion / folding (plain XLA, done once) ----
    wqk = jnp.concatenate([wq, wk], axis=1).astype(cd)                   # (dim, 2D)  fused q|k weight
    bqk = jnp.concatenate([bq, bk], axis=1).astype(f32)                  # (1, 2D)
    wpo = jnp.dot(wp, wo, precision=HI)                                  # (D, dh)    Wp @ Wo fold
    wstack = jnp.concatenate([wo, wpo], axis=0).astype(cd)               # (2D, dh)   [Wo ; Wp@Wo]
    cbias = (jnp.dot(bp, wo, precision=HI) + bo).astype(f32)             # (1, dh)    bp @ Wo + bo
    # query_weight row, pre-scaled and zero-padded over the k half.
    qwp_ext = jnp.concatenate([qwp.reshape(1, D) * scale,
                               jnp.zeros((1, D), qwp.dtype)], axis=1).astype(f32)     # (1, 2D)
    # Lane-placement constants for srow = qmask + attn_full @ kshift.
    kshift = jnp.zeros((two_d, two_d), f32).at[jnp.arange(D), jnp.arange(D) + D].set(1.0)
    qmask = jnp.concatenate([jnp.ones((1, D), f32), jnp.zeros((1, D), f32)], axis=1)   # (1, 2D)

    vmem_limit = _derive_vmem_limit()
    est = _fused_vmem_estimate(tb, N, dim, D, dh,
                               x_bytes=jnp.dtype(x.dtype).itemsize,
                               cd_bytes=jnp.dtype(cd).itemsize,
                               out_bytes=jnp.dtype(out_dtype).itemsize)
    if est > vmem_limit:
        # TODO(synk): token-tiled two-pass fallback (attn accumulated over token
        # tiles) for token slabs that do not fit VMEM.
        raise ValueError(f"fused token slab needs ~{est} bytes VMEM > limit "
                         f"{vmem_limit}; reduce tb or tile the token axis")

    grid = (B // tb,)
    w_map = lambda b: (0, 0)

    out = pl.pallas_call(
        functools.partial(_linear_attention_kernel, compute_dtype=cd),
        out_shape=jax.ShapeDtypeStruct((B, N, dh), out_dtype),
        grid_spec=pltpu.PrefetchScalarGridSpec(
            num_scalar_prefetch=0,
            grid=grid,
            in_specs=[
                pl.BlockSpec((tb, N, dim), lambda b: (b, 0, 0)),   # x (f32, cast in kernel)
                pl.BlockSpec((dim, two_d), w_map),                 # Wq|Wk
                pl.BlockSpec((1, two_d), w_map),                   # bq|bk
                pl.BlockSpec((1, two_d), w_map),                   # scale*query_weight | 0
                pl.BlockSpec((two_d, dh), w_map),                  # [Wo ; Wp@Wo]
                pl.BlockSpec((1, dh), w_map),                      # bp@Wo + bo
                pl.BlockSpec((two_d, two_d), w_map),               # kshift selector
                pl.BlockSpec((1, two_d), w_map),                   # qmask row
            ],
            out_specs=pl.BlockSpec((tb, N, dh), lambda b: (b, 0, 0)),
        ),
        compiler_params=pltpu.CompilerParams(
            # Batch axis is fully independent work.  TODO(synk): on v7x use
            # pltpu.CORE_PARALLEL here to shard across both TensorCores.
            dimension_semantics=("parallel",),
            vmem_limit_bytes=vmem_limit),
    )(x, wqk, bqk, qwp_ext, wstack, cbias, kshift, qmask)
    return out


# --------------------------------------------------------------------------
# References
# --------------------------------------------------------------------------
def reference_f32(x, params, *, scale):
    """Original LinearAttention.forward semantics, pure f32."""
    wq, bq, wk, bk, qwp, wp, bp, wo, bo = params
    HI = jax.lax.Precision.HIGHEST
    q = jnp.einsum('bnd,de->bne', x, wq, precision=HI) + bq
    k = jnp.einsum('bnd,de->bne', x, wk, precision=HI) + bk
    qw = jnp.einsum('bne,ek->bnk', q, qwp, precision=HI) * scale        # (B, N, 1)
    attn = jnp.sum(qw * q, axis=1, keepdims=True)                       # (B, 1, D)
    attn = jnp.repeat(attn, k.shape[1], axis=1)
    out = jnp.einsum('bne,ef->bnf', attn * k, wp, precision=HI) + bp + q
    return jnp.einsum('bne,ef->bnf', out, wo, precision=HI) + bo


def reference_folded(x, params, *, scale, compute_dtype):
    """Mirrors the kernel's algebra (Wq|Wk fusion, Wp@Wo fold, stacked [Wo;Wpo]
    output matmul, f32 qw/attn path) and its precision choices."""
    wq, bq, wk, bk, qwp, wp, bp, wo, bo = params
    HI = jax.lax.Precision.HIGHEST
    f32 = jnp.float32
    cd = compute_dtype
    D = wq.shape[1]

    wqk = jnp.concatenate([wq, wk], axis=1).astype(cd)
    bqk = jnp.concatenate([bq, bk], axis=1).astype(f32)
    wpo = jnp.dot(wp, wo, precision=HI)
    wstack = jnp.concatenate([wo, wpo], axis=0).astype(cd)
    cbias = (jnp.dot(bp, wo, precision=HI) + bo).astype(f32)
    qwp_ext = jnp.concatenate([qwp.reshape(1, D) * scale,
                               jnp.zeros((1, D), qwp.dtype)], axis=1).astype(f32)

    x_c = x.astype(cd)
    qk = jnp.einsum('bnd,de->bne', x_c, wqk,
                    preferred_element_type=f32, precision=HI) + bqk      # (B, N, 2D) f32
    qw = jnp.sum(qk * qwp_ext, axis=-1, keepdims=True)                   # (B, N, 1) f32
    attn = jnp.sum(qw * qk, axis=1, keepdims=True)[..., :D]              # (B, 1, D) f32
    srow = jnp.concatenate([jnp.ones_like(attn), attn], axis=-1)         # (B, 1, 2D)
    qk_scaled = (qk * srow).astype(cd)
    return jnp.einsum('bne,ef->bnf', qk_scaled, wstack,
                      preferred_element_type=f32, precision=HI) + cbias


if __name__ == "__main__":
    # Small shapes consistent with AttentionBlock's usage (tokens = H*W, H = W = 4).
    B, N = 2, 16
    dim, dim_head, num_heads = 32, 16, 2
    D = dim_head * num_heads
    scale = dim_head ** (-0.5)

    key = jax.random.PRNGKey(0)
    ks = jax.random.split(key, 10)

    x = jax.random.normal(ks[0], (B, N, dim), jnp.float32)
    wq = jax.random.normal(ks[1], (dim, D), jnp.float32) * 0.1
    bq = jax.random.normal(ks[2], (1, D), jnp.float32) * 0.1
    wk = jax.random.normal(ks[3], (dim, D), jnp.float32) * 0.1
    bk = jax.random.normal(ks[4], (1, D), jnp.float32) * 0.1
    qwp = jax.random.normal(ks[5], (D, 1), jnp.float32)          # query_weight Parameter
    wp = jax.random.normal(ks[6], (D, D), jnp.float32) * 0.1
    bp = jax.random.normal(ks[7], (1, D), jnp.float32) * 0.1
    wo = jax.random.normal(ks[8], (D, dim_head), jnp.float32) * 0.1
    bo = jax.random.normal(ks[9], (1, dim_head), jnp.float32) * 0.1
    params = (wq, bq, wk, bk, qwp, wp, bp, wo, bo)

    # tb=1 keeps the batch grid extent at 2 (independent batch-parallel steps).
    out = linear_attention(x, params, scale=scale, tb=1)
    out = jax.block_until_ready(out)
    assert out.shape == (B, N, dim_head), out.shape
    out_f32 = out.astype(jnp.float32)

    ref32 = reference_f32(x, params, scale=scale)
    ref_fold32 = reference_folded(x, params, scale=scale, compute_dtype=jnp.float32)
    ref_bf16 = reference_folded(x, params, scale=scale, compute_dtype=jnp.bfloat16)
    ref_bf16_q = ref_bf16.astype(out.dtype).astype(jnp.float32)   # match output rounding

    # 1) Wq|Wk fusion + Wp@Wo fold + [Wo;Wpo] stacking are algebraically faithful.
    assert jnp.allclose(ref_fold32, ref32, atol=1e-3, rtol=1e-3), \
        float(jnp.max(jnp.abs(ref_fold32 - ref32)))
    # 2) Kernel matches a reference with identical bf16-operand / f32-accumulate
    #    precision (including the bf16 output rounding).
    assert jnp.allclose(out_f32, ref_bf16_q, atol=2e-2, rtol=2e-2), \
        float(jnp.max(jnp.abs(out_f32 - ref_bf16_q)))
    # 3) Stays close to the pure-f32 module semantics (loose: bf16 MXU operands).
    assert jnp.allclose(out_f32, ref32, atol=2e-1, rtol=2e-1), \
        float(jnp.max(jnp.abs(out_f32 - ref32)))

    print("KERNEL_OK")
</pallas_src>

<mosaic_0001>
module attributes {stable_mosaic.version = 11 : i64} {
  func.func @_linear_attention_kernel(%arg0: i32, %arg1: memref<1x16x32xf32, #tpu.memory_space<vmem>>, %arg2: memref<32x64xbf16, #tpu.memory_space<vmem>>, %arg3: memref<1x64xf32, #tpu.memory_space<vmem>>, %arg4: memref<1x64xf32, #tpu.memory_space<vmem>>, %arg5: memref<64x16xbf16, #tpu.memory_space<vmem>>, %arg6: memref<1x16xf32, #tpu.memory_space<vmem>>, %arg7: memref<64x64xf32, #tpu.memory_space<vmem>>, %arg8: memref<1x64xf32, #tpu.memory_space<vmem>>, %arg9: memref<1x16x16xbf16, #tpu.memory_space<vmem>>) attributes {dimension_semantics = [#tpu.dimension_semantics<parallel>], iteration_bounds = array<i64: 2>, scalar_prefetch = 0 : i64, scratch_operands = 0 : i64, tpu.core_type = #tpu.core_type<tc>, window_params = [{transform_indices = @transform_0, window_bounds = array<i64: 1, 16, 32>}, {pipeline_mode = #tpu.pipeline_mode<synchronous>, transform_indices = @transform_1, window_bounds = array<i64: 32, 64>}, {pipeline_mode = #tpu.pipeline_mode<synchronous>, transform_indices = @transform_2, window_bounds = array<i64: 1, 64>}, {pipeline_mode = #tpu.pipeline_mode<synchronous>, transform_indices = @transform_3, window_bounds = array<i64: 1, 64>}, {pipeline_mode = #tpu.pipeline_mode<synchronous>, transform_indices = @transform_4, window_bounds = array<i64: 64, 16>}, {pipeline_mode = #tpu.pipeline_mode<synchronous>, transform_indices = @transform_5, window_bounds = array<i64: 1, 16>}, {pipeline_mode = #tpu.pipeline_mode<synchronous>, transform_indices = @transform_6, window_bounds = array<i64: 64, 64>}, {pipeline_mode = #tpu.pipeline_mode<synchronous>, transform_indices = @transform_7, window_bounds = array<i64: 1, 64>}, {transform_indices = @transform_8, window_bounds = array<i64: 1, 16, 16>}]} {
    %c0 = arith.constant 0 : index
    %c0_0 = arith.constant 0 : index
    %c0_1 = arith.constant 0 : index
    %0 = vector.load %arg1[%c0, %c0_0, %c0_1] : memref<1x16x32xf32, #tpu.memory_space<vmem>>, vector<1x16x32xf32>
    %1 = arith.truncf %0 : vector<1x16x32xf32> to vector<1x16x32xbf16>
    %2 = vector.shape_cast %1 : vector<1x16x32xbf16> to vector<16x32xbf16>
    %c0_2 = arith.constant 0 : index
    %c0_3 = arith.constant 0 : index
    %3 = vector.load %arg2[%c0_2, %c0_3] : memref<32x64xbf16, #tpu.memory_space<vmem>>, vector<32x64xbf16>
    %cst = arith.constant dense<0.000000e+00> : vector<16x64xf32>
    %4 = tpu.matmul %2, %3, %cst {dimension_numbers = #tpu.dot_dimension_numbers<[1], [0], [0], [1], [0, 0, 1, 1], [], []>} : vector<16x32xbf16>, vector<32x64xbf16>, vector<16x64xf32> -> vector<16x64xf32>
    %c0_4 = arith.constant 0 : index
    %c0_5 = arith.constant 0 : index
    %5 = vector.load %arg3[%c0_4, %c0_5] : memref<1x64xf32, #tpu.memory_space<vmem>>, vector<1x64xf32>
    %6 = vector.broadcast %5 : vector<1x64xf32> to vector<16x64xf32>
    %7 = arith.addf %4, %6 : vector<16x64xf32>
    %c0_6 = arith.constant 0 : index
    %c0_7 = arith.constant 0 : index
    %8 = vector.load %arg4[%c0_6, %c0_7] : memref<1x64xf32, #tpu.memory_space<vmem>>, vector<1x64xf32>
    %9 = vector.broadcast %8 : vector<1x64xf32> to vector<16x64xf32>
    %10 = arith.mulf %7, %9 : vector<16x64xf32>
    %cst_8 = arith.constant dense<0.000000e+00> : vector<16xf32>
    %11 = vector.multi_reduction <add>, %10, %cst_8 [1] : vector<16x64xf32> to vector<16xf32>
    %12 = vector.shape_cast %11 : vector<16xf32> to vector<16x1xf32>
    %13 = vector.shape_cast %7 : vector<16x64xf32> to vector<1x16x64xf32>
    %14 = vector.shape_cast %12 : vector<16x1xf32> to vector<1x16x1xf32>
    %15 = vector.broadcast %14 : vector<1x16x1xf32> to vector<1x16x64xf32>
    %16 = arith.mulf %15, %13 : vector<1x16x64xf32>
    %cst_9 = arith.constant dense<0.000000e+00> : vector<1x64xf32>
    %17 = vector.multi_reduction <add>, %16, %cst_9 [1] : vector<1x16x64xf32> to vector<1x64xf32>
    %c0_10 = arith.constant 0 : index
    %c0_11 = arith.constant 0 : index
    %18 = vector.load %arg8[%c0_10, %c0_11] : memref<1x64xf32, #tpu.memory_space<vmem>>, vector<1x64xf32>
    %c0_12 = arith.constant 0 : index
    %c0_13 = arith.constant 0 : index
    %19 = vector.load %arg7[%c0_12, %c0_13] : memref<64x64xf32, #tpu.memory_space<vmem>>, vector<64x64xf32>
    %cst_14 = arith.constant dense<0.000000e+00> : vector<1x64xf32>
    %20 = tpu.matmul %17, %19, %cst_14 {dimension_numbers = #tpu.dot_dimension_numbers<[1], [0], [0], [1], [0, 0, 1, 1], [], []>} : vector<1x64xf32>, vector<64x64xf32>, vector<1x64xf32> -> vector<1x64xf32>
    %21 = arith.addf %18, %20 : vector<1x64xf32>
    %22 = vector.shape_cast %21 : vector<1x64xf32> to vector<1x1x64xf32>
    %23 = vector.broadcast %22 : vector<1x1x64xf32> to vector<1x16x64xf32>
    %24 = arith.mulf %13, %23 : vector<1x16x64xf32>
    %25 = vector.shape_cast %24 : vector<1x16x64xf32> to vector<16x64xf32>
    %26 = arith.truncf %25 : vector<16x64xf32> to vector<16x64xbf16>
    %c0_15 = arith.constant 0 : index
    %c0_16 = arith.constant 0 : index
    %27 = vector.load %arg5[%c0_15, %c0_16] : memref<64x16xbf16, #tpu.memory_space<vmem>>, vector<64x16xbf16>
    %cst_17 = arith.constant dense<0.000000e+00> : vector<16x16xf32>
    %28 = tpu.matmul %26, %27, %cst_17 {dimension_numbers = #tpu.dot_dimension_numbers<[1], [0], [0], [1], [0, 0, 1, 1], [], []>} : vector<16x64xbf16>, vector<64x16xbf16>, vector<16x16xf32> -> vector<16x16xf32>
    %c0_18 = arith.constant 0 : index
    %c0_19 = arith.constant 0 : index
    %29 = vector.load %arg6[%c0_18, %c0_19] : memref<1x16xf32, #tpu.memory_space<vmem>>, vector<1x16xf32>
    %30 = vector.broadcast %29 : vector<1x16xf32> to vector<16x16xf32>
    %31 = arith.addf %28, %30 : vector<16x16xf32>
    %32 = vector.shape_cast %31 : vector<16x16xf32> to vector<1x16x16xf32>
    %33 = arith.truncf %32 : vector<1x16x16xf32> to vector<1x16x16xbf16>
    %c0_20 = arith.constant 0 : index
    %c0_21 = arith.constant 0 : index
    %c0_22 = arith.constant 0 : index
    %34 = vector.load %arg9[%c0_20, %c0_21, %c0_22] : memref<1x16x16xbf16, #tpu.memory_space<vmem>>, vector<1x16x16xbf16>
    tpu.vector_store %arg9[%c0_20, %c0_21, %c0_22], %33 {strides = array<i32>} : memref<1x16x16xbf16, #tpu.memory_space<vmem>>, vector<1x16x16xbf16>,
    return
  }
  func.func @transform_0(%arg0: i32) -> (i32, i32, i32) {
    %c0_i32 = arith.constant 0 : i32
    %c0_i32_0 = arith.constant 0 : i32
    %c0_i32_1 = arith.constant 0 : i32
    return %arg0, %c0_i32, %c0_i32_0 : i32, i32, i32
  }
  func.func @transform_1(%arg0: i32) -> (i32, i32) {
    %c0_i32 = arith.constant 0 : i32
    %c0_i32_0 = arith.constant 0 : i32
    %c0_i32_1 = arith.constant 0 : i32
    return %c0_i32, %c0_i32_0 : i32, i32
  }
  func.func @transform_2(%arg0: i32) -> (i32, i32) {
    %c0_i32 = arith.constant 0 : i32
    %c0_i32_0 = arith.constant 0 : i32
    %c0_i32_1 = arith.constant 0 : i32
    return %c0_i32, %c0_i32_0 : i32, i32
  }
  func.func @transform_3(%arg0: i32) -> (i32, i32) {
    %c0_i32 = arith.constant 0 : i32
    %c0_i32_0 = arith.constant 0 : i32
    %c0_i32_1 = arith.constant 0 : i32
    return %c0_i32, %c0_i32_0 : i32, i32
  }
  func.func @transform_4(%arg0: i32) -> (i32, i32) {
    %c0_i32 = arith.constant 0 : i32
    %c0_i32_0 = arith.constant 0 : i32
    %c0_i32_1 = arith.constant 0 : i32
    return %c0_i32, %c0_i32_0 : i32, i32
  }
  func.func @transform_5(%arg0: i32) -> (i32, i32) {
    %c0_i32 = arith.constant 0 : i32
    %c0_i32_0 = arith.constant 0 : i32
    %c0_i32_1 = arith.constant 0 : i32
    return %c0_i32, %c0_i32_0 : i32, i32
  }
  func.func @transform_6(%arg0: i32) -> (i32, i32) {
    %c0_i32 = arith.constant 0 : i32
    %c0_i32_0 = arith.constant 0 : i32
    %c0_i32_1 = arith.constant 0 : i32
    return %c0_i32, %c0_i32_0 : i32, i32
  }
  func.func @transform_7(%arg0: i32) -> (i32, i32) {
    %c0_i32 = arith.constant 0 : i32
    %c0_i32_0 = arith.constant 0 : i32
    %c0_i32_1 = arith.constant 0 : i32
    return %c0_i32, %c0_i32_0 : i32, i32
  }
  func.func @transform_8(%arg0: i32) -> (i32, i32, i32) {
    %c0_i32 = arith.constant 0 : i32
    %c0_i32_0 = arith.constant 0 : i32
    %c0_i32_1 = arith.constant 0 : i32
    return %arg0, %c0_i32, %c0_i32_0 : i32, i32, i32
  }
}

</mosaic_0001>

<llo_original>
// kernel: tpu_custom_call.1
$region0: #{tpu_custom_call.1}
  #allocation0 [shape = 'u32[]', space=smem, size = 0x4, offset = 0x4, fixed_abs, tag = 'smem constant byte address 0x4 - core index']
  #allocation1 [shape = 'u32[144,128]{1,0:T(1,128)}', space=vmem, size = 0x12000, scoped, tag = 'internal scratch']
  %s0 = inlined_call_operand.vmem [shape: f32[2,16,32], index: 0, kind: input, shape index: {}]
  %s1 = inlined_call_operand.hbm [shape: bf16[32,64], index: 1, kind: input, shape index: {}]
  %s2 = inlined_call_operand.vmem [shape: f32[1,64], index: 2, kind: input, shape index: {}]
  %s3 = inlined_call_operand.vmem [shape: f32[1,64], index: 3, kind: input, shape index: {}]
  %s4 = inlined_call_operand.vmem [shape: bf16[64,16], index: 4, kind: input, shape index: {}]
  %s5 = inlined_call_operand.vmem [shape: f32[1,16], index: 5, kind: input, shape index: {}]
  %s6 = inlined_call_operand.hbm [shape: f32[64,64], index: 6, kind: input, shape index: {}]
  %s7 = inlined_call_operand.vmem [shape: f32[1,64], index: 7, kind: input, shape index: {}]
  %s8 = inlined_call_operand.hbm [shape: bf16[2,16,16], index: 8, kind: output, shape index: {}]
  %s9 = sld [smem:[#allocation0]]
  $region73: #{tpu_custom_call.1} parent=0
    _
  %s11 = ssub.s32 1, %s9
  %s12 = scalar_select 0, %s11, %s9
  $region1: #{tpu_custom_call.1} parent=0
    #allocation2 [shape = 'u8[8192]{0}', space=vmem, size = 0x2000, scoped, tag = 'input window, operand 1, single buffered']
    #allocation3 [shape = 's32[2]{0}', space=sflag, size = 0x8, scoped, tag = 'scoped memory for tpu_custom_call.1']
    #allocation4 [shape = 's32[2]{0}', space=sflag, size = 0x8, scoped, tag = 'scoped memory for tpu_custom_call.1']
    #allocation5 [shape = 'u8[32768]{0}', space=vmem, size = 0x8000, scoped, tag = 'input window, operand 6, single buffered']
    #allocation6 [shape = 's32[1]{0}', space=sflag, size = 0x4, scoped, tag = 'scoped memory for tpu_custom_call.1']
    #allocation7 [shape = 'u8[8192]{0}', space=vmem, size = 0x2000, scoped, tag = 'output window, operand 0']
    %13 = vsyncpa [#allocation3], 0
    %14 = vsyncpa [#allocation6], 0
    %15 = vsyncpa [#allocation4], 0
    %s16 = scalar_lea.sflag [#allocation4], 1
    %17 = vsyncpa %s16, 0
    loop: start=0, step=1, limit=4
    $region2: #{tpu_custom_call.1} parent=1 // loop_pre_header
      _
    $region3: #{tpu_custom_call.1} parent=1 // loop_header
      %s19 = sphi 0, %s23
      %p20 = scmp.ge.s32.totalorder %s19, 4
      %s29 = sphi 0, %s31
      %s32 = sphi 0, %s29
      %s33 = sphi 0, %s32
      %s49 = sphi 0, %s33
      %s53 = sphi 0, %s53
      %s55 = sphi 0, %s53
      %s56 = sphi 0, %s55
      %s70 = sphi 0, %s56
      %s74 = sphi 0, %s74
      %s76 = sphi 0, %s74
      %s77 = sphi 0, %s76
      %s91 = sphi 0, %s77
      %s95 = sphi 0, %s95
      %s97 = sphi 0, %s95
      %s98 = sphi 0, %s97
      %s112 = sphi 0, %s98
      %s116 = sphi 0, %s116
      %s118 = sphi 0, %s116
      %s119 = sphi 0, %s118
      %s133 = sphi 0, %s119
      %s137 = sphi 0, %s137
      %s139 = sphi 0, %s137
      %s140 = sphi 0, %s139
      %s154 = sphi 0, %s140
      %s158 = sphi 0, %s158
      %s160 = sphi 0, %s158
      %s161 = sphi 0, %s160
      %s175 = sphi 0, %s161
      %s179 = sphi 0, %s179
      %s181 = sphi 0, %s179
      %s182 = sphi 0, %s181
      %s196 = sphi 0, %s182
      %s202 = sphi 0, %s204
      %s205 = sphi 0, %s202
      %s206 = sphi 0, %s205
      %s222 = sphi 0, %s206
    $region4: #{tpu_custom_call.1} parent=1 // loop_header_branch
      %22 = sbr.rel (%p20) target = $region8
    $region5: #{tpu_custom_call.1} parent=1 // loop_body
      %s24 = ssub.s32 %s19, 1
      %s25 = ssub.s32 %s19, 2
      %s26 = sadd.s32 %s19, 1
      %s27 = ssub.s32 %s19, %s26
      %p28 = scmp.eq.s32.totalorder %s27, 0
      %s30 = sadd.s32 %s29, 1
      %s31 = scalar_select %p28, %s29, %s30
      %p34 = pneg %p28
      %p35 = scmp.eq.s32.totalorder %s19, 1
      %p36 = por %p34, %p35
      %p37 = scmp.ne.s32.totalorder %s29, %s32
      %p38 = scmp.eq.s32.totalorder %s19, 0
      %p39 = por %p37, %p38
      %p40 = scmp.ne.s32.totalorder %s29, %s32
      %p41 = scmp.eq.s32.totalorder %s24, 1
      %p42 = por %p40, %p41
      %p43 = scmp.ne.s32.totalorder %s32, %s33
      %p44 = scmp.eq.s32.totalorder %s24, 0
      %p45 = por %p43, %p44
      %p46 = scmp.ne.s32.totalorder %s32, %s33
      %p47 = scmp.eq.s32.totalorder %s25, 1
      %p48 = por %p46, %p47
      %p50 = scmp.ne.s32.totalorder %s33, %s49
      %p51 = scmp.eq.s32.totalorder %s25, 0
      %p52 = por %p50, %p51
      %s54 = sadd.s32 %s53, 1
      %p57 = scmp.eq.s32.totalorder %s19, 1
      %p58 = scmp.ne.s32.totalorder %s53, %s55
      %p59 = scmp.eq.s32.totalorder %s19, 0
      %p60 = por %p58, %p59
      %p61 = scmp.ne.s32.totalorder %s53, %s55
      %p62 = scmp.eq.s32.totalorder %s24, 1
      %p63 = por %p61, %p62
      %p64 = scmp.ne.s32.totalorder %s55, %s56
      %p65 = scmp.eq.s32.totalorder %s24, 0
      %p66 = por %p64, %p65
      %p67 = scmp.ne.s32.totalorder %s55, %s56
      %p68 = scmp.eq.s32.totalorder %s25, 1
      %p69 = por %p67, %p68
      %p71 = scmp.ne.s32.totalorder %s56, %s70
      %p72 = scmp.eq.s32.totalorder %s25, 0
      %p73 = por %p71, %p72
      %s75 = sadd.s32 %s74, 1
      %p78 = scmp.eq.s32.totalorder %s19, 1
      %p79 = scmp.ne.s32.totalorder %s74, %s76
      %p80 = scmp.eq.s32.totalorder %s19, 0
      %p81 = por %p79, %p80
      %p82 = scmp.ne.s32.totalorder %s74, %s76
      %p83 = scmp.eq.s32.totalorder %s24, 1
      %p84 = por %p82, %p83
      %p85 = scmp.ne.s32.totalorder %s76, %s77
      %p86 = scmp.eq.s32.totalorder %s24, 0
      %p87 = por %p85, %p86
      %p88 = scmp.ne.s32.totalorder %s76, %s77
      %p89 = scmp.eq.s32.totalorder %s25, 1
      %p90 = por %p88, %p89
      %p92 = scmp.ne.s32.totalorder %s77, %s91
      %p93 = scmp.eq.s32.totalorder %s25, 0
      %p94 = por %p92, %p93
      %s96 = sadd.s32 %s95, 1
      %p99 = scmp.eq.s32.totalorder %s19, 1
      %p100 = scmp.ne.s32.totalorder %s95, %s97
      %p101 = scmp.eq.s32.totalorder %s19, 0
      %p102 = por %p100, %p101
      %p103 = scmp.ne.s32.totalorder %s95, %s97
      %p104 = scmp.eq.s32.totalorder %s24, 1
      %p105 = por %p103, %p104
      %p106 = scmp.ne.s32.totalorder %s97, %s98
      %p107 = scmp.eq.s32.totalorder %s24, 0
      %p108 = por %p106, %p107
      %p109 = scmp.ne.s32.totalorder %s97, %s98
      %p110 = scmp.eq.s32.totalorder %s25, 1
      %p111 = por %p109, %p110
      %p113 = scmp.ne.s32.totalorder %s98, %s112
      %p114 = scmp.eq.s32.totalorder %s25, 0
      %p115 = por %p113, %p114
      %s117 = sadd.s32 %s116, 1
      %p120 = scmp.eq.s32.totalorder %s19, 1
      %p121 = scmp.ne.s32.totalorder %s116, %s118
      %p122 = scmp.eq.s32.totalorder %s19, 0
      %p123 = por %p121, %p122
      %p124 = scmp.ne.s32.totalorder %s116, %s118
      %p125 = scmp.eq.s32.totalorder %s24, 1
      %p126 = por %p124, %p125
      %p127 = scmp.ne.s32.totalorder %s118, %s119
      %p128 = scmp.eq.s32.totalorder %s24, 0
      %p129 = por %p127, %p128
      %p130 = scmp.ne.s32.totalorder %s118, %s119
      %p131 = scmp.eq.s32.totalorder %s25, 1
      %p132 = por %p130, %p131
      %p134 = scmp.ne.s32.totalorder %s119, %s133
      %p135 = scmp.eq.s32.totalorder %s25, 0
      %p136 = por %p134, %p135
      %s138 = sadd.s32 %s137, 1
      %p141 = scmp.eq.s32.totalorder %s19, 1
      %p142 = scmp.ne.s32.totalorder %s137, %s139
      %p143 = scmp.eq.s32.totalorder %s19, 0
      %p144 = por %p142, %p143
      %p145 = scmp.ne.s32.totalorder %s137, %s139
      %p146 = scmp.eq.s32.totalorder %s24, 1
      %p147 = por %p145, %p146
      %p148 = scmp.ne.s32.totalorder %s139, %s140
      %p149 = scmp.eq.s32.totalorder %s24, 0
      %p150 = por %p148, %p149
      %p151 = scmp.ne.s32.totalorder %s139, %s140
      %p152 = scmp.eq.s32.totalorder %s25, 1
      %p153 = por %p151, %p152
      %p155 = scmp.ne.s32.totalorder %s140, %s154
      %p156 = scmp.eq.s32.totalorder %s25, 0
      %p157 = por %p155, %p156
      %s159 = sadd.s32 %s158, 1
      %p162 = scmp.eq.s32.totalorder %s19, 1
      %p163 = scmp.ne.s32.totalorder %s158, %s160
      %p164 = scmp.eq.s32.totalorder %s19, 0
      %p165 = por %p163, %p164
      %p166 = scmp.ne.s32.totalorder %s158, %s160
      %p167 = scmp.eq.s32.totalorder %s24, 1
      %p168 = por %p166, %p167
      %p169 = scmp.ne.s32.totalorder %s160, %s161
      %p170 = scmp.eq.s32.totalorder %s24, 0
      %p171 = por %p169, %p170
      %p172 = scmp.ne.s32.totalorder %s160, %s161
      %p173 = scmp.eq.s32.totalorder %s25, 1
      %p174 = por %p172, %p173
      %p176 = scmp.ne.s32.totalorder %s161, %s175
      %p177 = scmp.eq.s32.totalorder %s25, 0
      %p178 = por %p176, %p177
      %s180 = sadd.s32 %s179, 1
      %p183 = scmp.eq.s32.totalorder %s19, 1
      %p184 = scmp.ne.s32.totalorder %s179, %s181
      %p185 = scmp.eq.s32.totalorder %s19, 0
      %p186 = por %p184, %p185
      %p187 = scmp.ne.s32.totalorder %s179, %s181
      %p188 = scmp.eq.s32.totalorder %s24, 1
      %p189 = por %p187, %p188
      %p190 = scmp.ne.s32.totalorder %s181, %s182
      %p191 = scmp.eq.s32.totalorder %s24, 0
      %p192 = por %p190, %p191
      %p193 = scmp.ne.s32.totalorder %s181, %s182
      %p194 = scmp.eq.s32.totalorder %s25, 1
      %p195 = por %p193, %p194
      %p197 = scmp.ne.s32.totalorder %s182, %s196
      %p198 = scmp.eq.s32.totalorder %s25, 0
      %p199 = por %p197, %p198
      %s200 = ssub.s32 %s19, %s26
      %p201 = scmp.eq.s32.totalorder %s200, 0
      %s203 = sadd.s32 %s202, 1
      %s204 = scalar_select %p201, %s202, %s203
      %p207 = pneg %p201
      %p208 = scmp.eq.s32.totalorder %s19, 1
      %p209 = por %p207, %p208
      %p210 = scmp.ne.s32.totalorder %s202, %s205
      %p211 = scmp.eq.s32.totalorder %s19, 0
      %p212 = por %p210, %p211
      %p213 = scmp.ne.s32.totalorder %s202, %s205
      %p214 = scmp.eq.s32.totalorder %s24, 1
      %p215 = por %p213, %p214
      %p216 = scmp.ne.s32.totalorder %s205, %s206
      %p217 = scmp.eq.s32.totalorder %s24, 0
      %p218 = por %p216, %p217
      %p219 = scmp.ne.s32.totalorder %s205, %s206
      %p220 = scmp.eq.s32.totalorder %s25, 1
      %p221 = por %p219, %p220
      %p223 = scmp.ne.s32.totalorder %s206, %s222
      %p224 = scmp.eq.s32.totalorder %s25, 0
      %p225 = por %p223, %p224
      %p226 = scmp.le.s32.totalorder 1, %s19
      %p227 = scmp.lt.s32.totalorder %s19, 3
      %p228 = pnand %p226, %p227
      %p229 = pneg %p228
      // Predicated region
      $region9: #{tpu_custom_call.1} parent=5 // pred_check
        _
      $region10: #{tpu_custom_call.1} parent=5 // pred_check_branch
        %231 = sbr.rel (%p228) target = $region12
      $region11: #{tpu_custom_call.1} parent=5 // pred_region
        %s232 = ssub.s32 %s19, 1
        // Predicated region
        $region13: #{tpu_custom_call.1} parent=11 // pred_check
          %p233 = pneg %p66
        $region14: #{tpu_custom_call.1} parent=11 // pred_check_branch
          %235 = sbr.rel (%p233) target = $region16
        $region15: #{tpu_custom_call.1} parent=11 // pred_region
          %s237 = ssub.s32 256, 256
          %238 = vsyncadd [#allocation3], %s237
          %s239 = sshll.u32 [#allocation2], 4
          %s240 = int_to_ptr.vmem [resolvable:$true] %s239
          %245 = dma.hbm_to_vmem [thread:$0]  %s1, 256, %s240, [#allocation3], 64, 64, 4
        $region16: #{tpu_custom_call.1} parent=11 // pred_fallthru
          _
        // Predicated region
        $region17: #{tpu_custom_call.1} parent=11 // pred_check
          %p246 = pneg %p87
        $region18: #{tpu_custom_call.1} parent=11 // pred_check_branch
          %248 = sbr.rel (%p246) target = $region20
        $region19: #{tpu_custom_call.1} parent=11 // pred_region
          _
        $region20: #{tpu_custom_call.1} parent=11 // pred_fallthru
          _
        // Predicated region
        $region21: #{tpu_custom_call.1} parent=11 // pred_check
          %p249 = pneg %p108
        $region22: #{tpu_custom_call.1} parent=11 // pred_check_branch
          %251 = sbr.rel (%p249) target = $region24
        $region23: #{tpu_custom_call.1} parent=11 // pred_region
          _
        $region24: #{tpu_custom_call.1} parent=11 // pred_fallthru
          _
        // Predicated region
        $region25: #{tpu_custom_call.1} parent=11 // pred_check
          %p252 = pneg %p129
        $region26: #{tpu_custom_call.1} parent=11 // pred_check_branch
          %254 = sbr.rel (%p252) target = $region28
        $region27: #{tpu_custom_call.1} parent=11 // pred_region
          _
        $region28: #{tpu_custom_call.1} parent=11 // pred_fallthru
          _
        // Predicated region
        $region29: #{tpu_custom_call.1} parent=11 // pred_check
          %p255 = pneg %p150
        $region30: #{tpu_custom_call.1} parent=11 // pred_check_branch
          %257 = sbr.rel (%p255) target = $region32
        $region31: #{tpu_custom_call.1} parent=11 // pred_region
          _
        $region32: #{tpu_custom_call.1} parent=11 // pred_fallthru
          _
        // Predicated region
        $region33: #{tpu_custom_call.1} parent=11 // pred_check
          %p258 = pneg %p171
        $region34: #{tpu_custom_call.1} parent=11 // pred_check_branch
          %260 = sbr.rel (%p258) target = $region36
        $region35: #{tpu_custom_call.1} parent=11 // pred_region
          %s262 = ssub.s32 1024, 1024
          %263 = vsyncadd [#allocation6], %s262
          %s264 = sshll.u32 [#allocation5], 4
          %s265 = int_to_ptr.vmem [resolvable:$true] %s264
          %270 = dma.hbm_to_vmem [thread:$0]  %s6, 1024, %s265, [#allocation6], 128, 128, 8
        $region36: #{tpu_custom_call.1} parent=11 // pred_fallthru
          _
        // Predicated region
        $region37: #{tpu_custom_call.1} parent=11 // pred_check
          %p271 = pneg %p192
        $region38: #{tpu_custom_call.1} parent=11 // pred_check_branch
          %273 = sbr.rel (%p271) target = $region40
        $region39: #{tpu_custom_call.1} parent=11 // pred_region
          _
        $region40: #{tpu_custom_call.1} parent=11 // pred_fallthru
          _
      $region12: #{tpu_custom_call.1} parent=5 // pred_fallthru
        _
      %p274 = scmp.lt.s32.totalorder %s19, 2
      // Predicated region
      $region41: #{tpu_custom_call.1} parent=5 // pred_check
        %p275 = pneg %p274
      $region42: #{tpu_custom_call.1} parent=5 // pred_check_branch
        %277 = sbr.rel (%p275) target = $region44
      $region43: #{tpu_custom_call.1} parent=5 // pred_region
        // Predicated region
        $region45: #{tpu_custom_call.1} parent=43 // pred_check
          %p278 = pneg %p39
        $region46: #{tpu_custom_call.1} parent=43 // pred_check_branch
          %280 = sbr.rel (%p278) target = $region48
        $region47: #{tpu_custom_call.1} parent=43 // pred_region
          %p281 = scmp.lt.s32.totalorder %s19, 1
          %s282 = scalar_select %p281, %s19, 1
          %s283 = smul.addr %s282, 2
          %s284 = smul.addr %s283, 8
          %s285 = scalar_lea.vmem %s0, %s284
        $region48: #{tpu_custom_call.1} parent=43 // pred_fallthru
          _
      $region44: #{tpu_custom_call.1} parent=5 // pred_fallthru
        _
      %p286 = scmp.le.s32.totalorder 1, %s19
      %p287 = scmp.lt.s32.totalorder %s19, 3
      %p288 = pnand %p286, %p287
      %p289 = pneg %p288
      // Predicated region
      $region49: #{tpu_custom_call.1} parent=5 // pred_check
        _
      $region50: #{tpu_custom_call.1} parent=5 // pred_check_branch
        %291 = sbr.rel (%p288) target = $region52
      $region51: #{tpu_custom_call.1} parent=5 // pred_region
        %s292 = ssub.s32 %s19, 1
        // Predicated region
        $region53: #{tpu_custom_call.1} parent=51 // pred_check
          %p293 = pneg %p66
        $region54: #{tpu_custom_call.1} parent=51 // pred_check_branch
          %295 = sbr.rel (%p293) target = $region56
        $region55: #{tpu_custom_call.1} parent=51 // pred_region
          %296 = dma.done [#allocation3], 256
        $region56: #{tpu_custom_call.1} parent=51 // pred_fallthru
          _
        // Predicated region
        $region57: #{tpu_custom_call.1} parent=51 // pred_check
          %p297 = pneg %p171
        $region58: #{tpu_custom_call.1} parent=51 // pred_check_branch
          %299 = sbr.rel (%p297) target = $region60
        $region59: #{tpu_custom_call.1} parent=51 // pred_region
          %300 = dma.done [#allocation6], 1024
        $region60: #{tpu_custom_call.1} parent=51 // pred_fallthru
          _
        %p301 = scmp.lt.s32.totalorder %s24, 1
        %s302 = scalar_select %p301, %s24, 1
        %s303 = smul.addr %s302, 2
        %s304 = smul.addr %s303, 8
        %s305 = scalar_lea.vmem %s0, %s304
        %p306 = pneg %p45
        %p307 = pneg %p42
        %p308 = pneg %p66
        %p309 = pneg %p63
        %p310 = pneg %p87
        %p311 = pneg %p84
        %p312 = pneg %p108
        %p313 = pneg %p105
        %p314 = pneg %p129
        %p315 = pneg %p126
        %p316 = pneg %p150
        %p317 = pneg %p147
        %p318 = pneg %p171
        %p319 = pneg %p168
        %p320 = pneg %p192
        %p321 = pneg %p189
        %p322 = pneg %p218
        %p323 = pneg %p215
        %s324 = sand.u32 %s205, 1
        %s325 = scalar_lea.sflag [#allocation4], %s324
        %s326 = sand.u32 %s205, 1
        %s327 = smul.addr %s326, 8
        %s328 = scalar_lea.vmem [#allocation7], %s327
        %p329 = scmp.lt.s32.totalorder %s24, 1
        %s330 = scalar_select %p329, %s24, 1
        %s331 = smul.addr %s330, 2
        %s332 = smul.addr %s331, 8
        %s333 = scalar_lea.vmem %s0, %s332
        %v335 = vld [vmem:[%s333] sm:$0xff]
        %v336 = vld [vmem:[%s333 + $0x8] sm:$0xff]
        %v337 = vpack.c.bf16 %v336, %v335
        %v338 = vld [vmem:[#allocation2] sm:$0xf]
        %v339 = vld [vmem:[#allocation2 + $0x4] sm:$0xf]
        %v340 = vld [vmem:[#allocation2 + $0x8] sm:$0xf]
        %v341 = vld [vmem:[#allocation2 + $0xc] sm:$0xf]
        %v342 = vld [vmem:[%s2] sm:$0x1]
        %v344 = vlaneseq
        %v345 = vshrl.u32 %v344, 7
        %v346 = vsub.s32 0, %v345
        %v347 = vrot.slane %v342, %v346
        %v353 = vunpack.c.l.b16 %v338
        %v354 = vunpack.c.l.b16 %v339
        %v355 = vunpack.c.l.b16 %v340
        %v356 = vunpack.c.l.b16 %v341
        %v357 = vpack.c.b16 %v354, %v353
        %v358 = vpack.c.b16 %v356, %v355
        %vm361 = vcmask 261120
        %v363 = vsel %vm361, %v337, 0
        %365 = vmatprep.subr.bf16.mxu0 0
        %366 = vmatpush1.bf16.msra.mxu0 0
        %367 = vmatprep.subr.bf16.mxu0 0
        %368 = vmatpush1.bf16.msra.mxu0 0
        %369 = vmatprep.subr.bf16.mxu0 0
        %370 = vmatpush1.bf16.msra.mxu0 0
        %371 = vmatprep.subr.bf16.mxu0 0
        %372 = vmatpush1.bf16.msra.mxu0 0
        %373 = vmatprep.subr.bf16.mxu0 0
        %374 = vmatpush1.bf16.msra.mxu0 0
        %375 = vmatprep.subr.bf16.mxu0 0
        %376 = vmatpush1.bf16.msra.mxu0 0
        %377 = vmatprep.subr.bf16.mxu0 0
        %378 = vmatpush1.bf16.msra.mxu0 %v358
        %379 = vmatprep.subr.bf16.mxu0 0
        %380 = vmatpush1.bf16.msra.mxu0 %v357
        %381 = vmatprep.subr.bf16.mxu0 0
        %382 = vmatpush2.bf16.msra.mxu0 0
        %383 = vmatprep.subr.bf16.mxu0 0
        %384 = vmatpush2.bf16.msra.mxu0 0
        %385 = vmatprep.subr.bf16.mxu0 0
        %386 = vmatpush2.bf16.msra.mxu0 0
        %387 = vmatprep.subr.bf16.mxu0 0
        %388 = vmatpush2.bf16.msra.mxu0 0
        %389 = vmatprep.subr.bf16.mxu0 0
        %390 = vmatpush2.bf16.msra.mxu0 0
        %391 = vmatprep.subr.bf16.mxu0 0
        %392 = vmatpush2.bf16.msra.mxu0 0
        %393 = vmatprep.subr.bf16.mxu0 0
        %394 = vmatpush2.bf16.msra.mxu0 0
        %395 = vmatprep.subr.bf16.mxu0 0
        %396 = vmatpush2.bf16.msra.mxu0 0
        %397 = vmatprep.mubr.bf16.mxu0 0
        %398 = vmatmul.mubr.bf16.gmra.mxu0 %v363
        %v399 = vpop.f32.mrf.mxu0
        %v400 = vadd.f32 %v347, %v399
        %v401 = vpop.f32.mrf.mxu0
        %v402 = vpop.f32.mrf.mxu0
        %v403 = vadd.f32 %v347, %v402
        %v404 = vpop.f32.mrf.mxu0
        %405 = vdwg.mxu0
        %v406 = vld [vmem:[%s3] sm:$0x1]
        %v408 = vlaneseq
        %v409 = vshrl.u32 %v408, 7
        %v410 = vsub.s32 0, %v409
        %v411 = vrot.slane %v406, %v410
        %v413 = vmul.f32 %v400, %v411
        %v414 = vmul.f32 %v403, %v411
        %vm415 = vcmask 523264
        %v416 = vsel %vm415, %v413, 0.0
        %417 = vadd.xlane.f32.xlu0 %v416
        %v418 = vpop.xlane.xlu0 %417
        %v419 = vsel %vm415, %v414, 0.0
        %420 = vadd.xlane.f32.xlu0 %v419
        %v421 = vpop.xlane.xlu0 %420
        %v422 = vmul.f32 %v418, %v400
        %v423 = vmul.f32 %v421, %v403
        %v424 = vsel %vm415, %v422, 0.0
        %v425 = vsel %vm415, %v423, 0.0
        %v426 = vadd.f32 %v424, %v425
        %v427 = vrot.slane %v426, 4
        %v428 = vadd.f32 %v426, %v427
        %v429 = vrot.slane %v428, 2
        %v430 = vadd.f32 %v428, %v429
        %v431 = vrot.slane %v430, 1
        %v432 = vadd.f32 %v430, %v431
        %v433 = vld [vmem:[%s7] sm:$0x1]
        %v434 = vld [vmem:[#allocation5] sm:$0xff]
        %v435 = vld [vmem:[#allocation5 + $0x8] sm:$0xff]
        %v436 = vld [vmem:[#allocation5 + $0x10] sm:$0xff]
        %v437 = vld [vmem:[#allocation5 + $0x18] sm:$0xff]
        %v438 = vld [vmem:[#allocation5 + $0x20] sm:$0xff]
        %v439 = vld [vmem:[#allocation5 + $0x28] sm:$0xff]
        %v440 = vld [vmem:[#allocation5 + $0x30] sm:$0xff]
        %v441 = vld [vmem:[#allocation5 + $0x38] sm:$0xff]
        %v443 = vsel %vm415, %v432, 0
        %445 = vmatprep.subr.mxu0 0.0
        %446 = vmatpush1.msra.mxu0 0.0
        %447 = vmatprep.subr.mxu0 0.0
        %448 = vmatpush1.msra.mxu0 0.0
        %449 = vmatprep.subr.mxu0 0.0
        %450 = vmatpush1.msra.mxu0 0.0
        %451 = vmatprep.subr.mxu0 0.0
        %452 = vmatpush1.msra.mxu0 0.0
        %453 = vmatprep.subr.mxu0 0.0
        %454 = vmatpush1.msra.mxu0 0.0
        %455 = vmatprep.subr.mxu0 0.0
        %456 = vmatpush1.msra.mxu0 0.0
        %457 = vmatprep.subr.mxu0 0.0
        %458 = vmatpush1.msra.mxu0 0.0
        %459 = vmatprep.subr.mxu0 0.0
        %460 = vmatpush1.msra.mxu0 0.0
        %461 = vmatprep.subr.mxu0 0.0
        %462 = vmatpush1.msra.mxu0 %v441
        %463 = vmatprep.subr.mxu0 0.0
        %464 = vmatpush1.msra.mxu0 %v440
        %465 = vmatprep.subr.mxu0 0.0
        %466 = vmatpush1.msra.mxu0 %v439
        %467 = vmatprep.subr.mxu0 0.0
        %468 = vmatpush1.msra.mxu0 %v438
        %469 = vmatprep.subr.mxu0 0.0
        %470 = vmatpush1.msra.mxu0 %v437
        %471 = vmatprep.subr.mxu0 0.0
        %472 = vmatpush1.msra.mxu0 %v436
        %473 = vmatprep.subr.mxu0 0.0
        %474 = vmatpush1.msra.mxu0 %v435
        %475 = vmatprep.subr.mxu0 0.0
        %476 = vmatpush1.msra.mxu0 %v434
        %477 = vmatprep.subr.mxu0 0.0
        %478 = vmatpush2.msra.mxu0 0.0
        %479 = vmatprep.subr.mxu0 0.0
        %480 = vmatpush2.msra.mxu0 0.0
        %481 = vmatprep.subr.mxu0 0.0
        %482 = vmatpush2.msra.mxu0 0.0
        %483 = vmatprep.subr.mxu0 0.0
        %484 = vmatpush2.msra.mxu0 0.0
        %485 = vmatprep.subr.mxu0 0.0
        %486 = vmatpush2.msra.mxu0 0.0
        %487 = vmatprep.subr.mxu0 0.0
        %488 = vmatpush2.msra.mxu0 0.0
        %489 = vmatprep.subr.mxu0 0.0
        %490 = vmatpush2.msra.mxu0 0.0
        %491 = vmatprep.subr.mxu0 0.0
        %492 = vmatpush2.msra.mxu0 0.0
        %493 = vmatprep.subr.mxu0 0.0
        %494 = vmatpush2.msra.mxu0 0.0
        %495 = vmatprep.subr.mxu0 0.0
        %496 = vmatpush2.msra.mxu0 0.0
        %497 = vmatprep.subr.mxu0 0.0
        %498 = vmatpush2.msra.mxu0 0.0
        %499 = vmatprep.subr.mxu0 0.0
        %500 = vmatpush2.msra.mxu0 0.0
        %501 = vmatprep.subr.mxu0 0.0
        %502 = vmatpush2.msra.mxu0 0.0
        %503 = vmatprep.subr.mxu0 0.0
        %504 = vmatpush2.msra.mxu0 0.0
        %505 = vmatprep.subr.mxu0 0.0
        %506 = vmatpush2.msra.mxu0 0.0
        %507 = vmatprep.subr.mxu0 0.0
        %508 = vmatpush2.msra.mxu0 0.0
        %509 = vmatprep.mubr.f32.mxu0 0.0
        %510 = vmatmul.mubr.f32.gmra.mxu0 %v443
        %v511 = vpop.f32.mrf.mxu0
        %v512 = vadd.f32 0.0, %v511
        %v513 = vpop.f32.mrf.mxu0
        %514 = vdwg.mxu0
        %v515 = vadd.f32 %v433, %v512
        %v517 = vlaneseq
        %v518 = vshrl.u32 %v517, 7
        %v519 = vsub.s32 0, %v518
        %v520 = vrot.slane %v515, %v519
        %v522 = vmul.f32 %v400, %v520
        %v523 = vmul.f32 %v403, %v520
        %v524 = vpack.c.bf16 %v523, %v522
        %v525 = vld [vmem:[%s4] sm:$0xf]
        %v526 = vld [vmem:[%s4 + $0x4] sm:$0xf]
        %v527 = vld [vmem:[%s4 + $0x8] sm:$0xf]
        %v528 = vld [vmem:[%s4 + $0xc] sm:$0xf]
        %v529 = vld [vmem:[%s4 + $0x10] sm:$0xf]
        %v530 = vld [vmem:[%s4 + $0x14] sm:$0xf]
        %v531 = vld [vmem:[%s4 + $0x18] sm:$0xf]
        %v532 = vld [vmem:[%s4 + $0x1c] sm:$0xf]
        %v533 = vld [vmem:[%s5] sm:$0x1]
        %v535 = vlaneseq
        %v536 = vshrl.u32 %v535, 7
        %v537 = vsub.s32 0, %v536
        %v538 = vrot.slane %v533, %v537
        %v548 = vunpack.c.l.b16 %v525
        %v549 = vunpack.c.l.b16 %v526
        %v550 = vunpack.c.l.b16 %v527
        %v551 = vunpack.c.l.b16 %v528
        %v552 = vunpack.c.l.b16 %v529
        %v553 = vunpack.c.l.b16 %v530
        %v554 = vunpack.c.l.b16 %v531
        %v555 = vunpack.c.l.b16 %v532
        %v556 = vpack.c.b16 %v549, %v548
        %v557 = vpack.c.b16 %v551, %v550
        %v558 = vpack.c.b16 %v553, %v552
        %v559 = vpack.c.b16 %v555, %v554
        %v565 = vsel %vm415, %v524, 0
        %567 = vmatprep.subr.bf16.mxu0 0
        %568 = vmatpush1.bf16.msra.mxu0 0
        %569 = vmatprep.subr.bf16.mxu0 0
        %570 = vmatpush1.bf16.msra.mxu0 0
        %571 = vmatprep.subr.bf16.mxu0 0
        %572 = vmatpush1.bf16.msra.mxu0 0
        %573 = vmatprep.subr.bf16.mxu0 0
        %574 = vmatpush1.bf16.msra.mxu0 0
        %575 = vmatprep.subr.bf16.mxu0 0
        %576 = vmatpush1.bf16.msra.mxu0 %v559
        %577 = vmatprep.subr.bf16.mxu0 0
        %578 = vmatpush1.bf16.msra.mxu0 %v558
        %579 = vmatprep.subr.bf16.mxu0 0
        %580 = vmatpush1.bf16.msra.mxu0 %v557
        %581 = vmatprep.subr.bf16.mxu0 0
        %582 = vmatpush1.bf16.msra.mxu0 %v556
        %583 = vmatprep.subr.bf16.mxu0 0
        %584 = vmatpush2.bf16.msra.mxu0 0
        %585 = vmatprep.subr.bf16.mxu0 0
        %586 = vmatpush2.bf16.msra.mxu0 0
        %587 = vmatprep.subr.bf16.mxu0 0
        %588 = vmatpush2.bf16.msra.mxu0 0
        %589 = vmatprep.subr.bf16.mxu0 0
        %590 = vmatpush2.bf16.msra.mxu0 0
        %591 = vmatprep.subr.bf16.mxu0 0
        %592 = vmatpush2.bf16.msra.mxu0 0
        %593 = vmatprep.subr.bf16.mxu0 0
        %594 = vmatpush2.bf16.msra.mxu0 0
        %595 = vmatprep.subr.bf16.mxu0 0
        %596 = vmatpush2.bf16.msra.mxu0 0
        %597 = vmatprep.subr.bf16.mxu0 0
        %598 = vmatpush2.bf16.msra.mxu0 0
        %599 = vmatprep.mubr.bf16.mxu0 0
        %600 = vmatmul.mubr.bf16.gmra.mxu0 %v565
        %v601 = vpop.f32.mrf.mxu0
        %v602 = vadd.f32 %v538, %v601
        %v603 = vpop.f32.mrf.mxu0
        %v604 = vpop.f32.mrf.mxu0
        %v605 = vadd.f32 %v538, %v604
        %v606 = vpop.f32.mrf.mxu0
        %607 = vdwg.mxu0
        %v608 = vpack.c.bf16 %v605, %v602
        %v610 = vunpack.c.l.b16 %v608
        %v611 = vunpack.c.h.b16 %v608
        %v612 = vpack.c.b16 %v610, %v610
        %v613 = vpack.c.b16 %v611, %v611
        %vm616 = vcmask 125952
        %617 = vst.msk [vmem:[%s328] sm:$0xf] %vm616, %v612
        %618 = vst.msk [vmem:[%s328 + $0x4] sm:$0xf] %vm616, %v613
        %s619 = sand.u32 %s205, 1
        %s620 = scalar_lea.sflag [#allocation4], %s619
        %s621 = sand.u32 %s205, 1
        %s622 = smul.addr %s621, 8
        %s623 = scalar_lea.vmem [#allocation7], %s622
        // Predicated region
        $region61: #{tpu_custom_call.1} parent=51 // pred_check
          %p624 = pneg %p215
        $region62: #{tpu_custom_call.1} parent=51 // pred_check_branch
          %626 = sbr.rel (%p624) target = $region64
        $region63: #{tpu_custom_call.1} parent=51 // pred_region
          %s628 = ssub.s32 128, 128
          %629 = vsyncadd %s620, %s628
          %s630 = smul.addr %s24, 2
          %s631 = smul.addr %s630, 64
          %s632 = scalar_lea.hbm %s8, %s631
          %s633 = sshll.u32 %s623, 4
          %s634 = int_to_ptr.vmem [resolvable:$true] %s633
          %639 = dma.vmem_to_hbm [thread:$0]  %s634, 128, %s632, %s620, 64, 64, 4
        $region64: #{tpu_custom_call.1} parent=51 // pred_fallthru
          _
      $region52: #{tpu_custom_call.1} parent=5 // pred_fallthru
        _
      %p640 = scmp.le.s32.totalorder 2, %s19
      // Predicated region
      $region65: #{tpu_custom_call.1} parent=5 // pred_check
        %p641 = pneg %p640
      $region66: #{tpu_custom_call.1} parent=5 // pred_check_branch
        %643 = sbr.rel (%p641) target = $region68
      $region67: #{tpu_custom_call.1} parent=5 // pred_region
        %s644 = ssub.s32 %s19, 2
        // Predicated region
        $region69: #{tpu_custom_call.1} parent=67 // pred_check
          %p645 = pneg %p221
        $region70: #{tpu_custom_call.1} parent=67 // pred_check_branch
          %647 = sbr.rel (%p645) target = $region72
        $region71: #{tpu_custom_call.1} parent=67 // pred_region
          %s648 = sand.u32 %s206, 1
          %s649 = scalar_lea.sflag [#allocation4], %s648
          %s650 = sand.u32 %s206, 1
          %s651 = smul.addr %s650, 8
          %s652 = scalar_lea.vmem [#allocation7], %s651
          %653 = dma.done %s649, 128
        $region72: #{tpu_custom_call.1} parent=67 // pred_fallthru
          _
      $region68: #{tpu_custom_call.1} parent=5 // pred_fallthru
        _
    $region6: #{tpu_custom_call.1} parent=1 // loop_footer
      %s23 = sadd.s32 1, %s19
    $region7: #{tpu_custom_call.1} parent=1 // loop_footer_branch
      %18 = sbr.rel target = $region3
    $region8: #{tpu_custom_call.1} parent=1 // loop_exit
      _
    %654 = vsyncpa [#allocation3], 1
    %s655 = scalar_lea.sflag [#allocation3], 1
    %656 = vsyncpa %s655, 1
    %657 = vsyncpa [#allocation6], 1
    %658 = vsyncpa [#allocation4], 1
    %s659 = scalar_lea.sflag [#allocation4], 1
    %660 = vsyncpa %s659, 1

</llo_original>
